<compile_context>
chip_gen: v6e
topology: v6e:2x2x1
jax: 0.10.0
libtpu: 0.0.40
codegen_flags: <defaults>
</compile_context>

<pallas_src>
import math
import jax
import jax.numpy as jnp
from jax.experimental import pallas as pl
from jax.experimental.pallas import tpu as pltpu


_INV_SQRT2 = 1.0 / math.sqrt(2.0)


def _erf(x):
    # Abramowitz & Stegun 7.1.26 polynomial (max abs err ~1.5e-7), built only
    # from ops guaranteed to lower in Mosaic (abs / exp / mul / add / where).
    # TODO(synk): switch to lax.erf if/when its Pallas-TPU lowering is guaranteed.
    p = 0.3275911
    a1, a2, a3, a4, a5 = (0.254829592, -0.284496736, 1.421413741,
                          -1.453152027, 1.061405429)
    ax = jnp.abs(x)
    t = 1.0 / (1.0 + p * ax)
    poly = t * (a1 + t * (a2 + t * (a3 + t * (a4 + t * a5))))
    y = 1.0 - poly * jnp.exp(-ax * ax)
    return jnp.where(x < 0, -y, y)


def _gelu(x):
    return x * 0.5 * (1.0 + _erf(x * _INV_SQRT2))


def _bert_intermediate_kernel(x_ref, w_ref, b_ref, o_ref, acc_ref):
    k = pl.program_id(2)

    @pl.when(k == 0)
    def _():
        acc_ref[...] = jnp.zeros_like(acc_ref)

    acc_ref[...] += jnp.dot(x_ref[...], w_ref[...],
                            preferred_element_type=jnp.float32)

    @pl.when(k == pl.num_programs(2) - 1)
    def _():
        y = acc_ref[...] + b_ref[...]             # (tm, tn) + (1, tn) broadcast
        o_ref[...] = _gelu(y).astype(o_ref.dtype)


def _round_up(x, m):
    return (x + m - 1) // m * m


def bert_intermediate_forward(hidden_states, w_t, bias, *,
                              block_m=128, block_n=512, block_k=256):
    """y = gelu(hidden_states @ w_t + bias).

    hidden_states: (..., K) float32
    w_t          : (K, N)   float32  (== torch nn.Linear weight, transposed)
    bias         : (N,)     float32
    """
    K, N = w_t.shape
    assert hidden_states.shape[-1] == K
    out_shape = hidden_states.shape[:-1] + (N,)

    x = hidden_states.reshape(-1, K)
    m = x.shape[0]

    tm = min(block_m, _round_up(m, 8))
    tn = min(block_n, N)
    tk = min(block_k, K)
    assert N % tn == 0 and K % tk == 0, (N, tn, K, tk)

    m_pad = _round_up(m, tm)
    if m_pad != m:
        x = jnp.pad(x, ((0, m_pad - m), (0, 0)))

    grid = (m_pad // tm, N // tn, K // tk)

    out = pl.pallas_call(
        _bert_intermediate_kernel,
        out_shape=jax.ShapeDtypeStruct((m_pad, N), hidden_states.dtype),
        grid_spec=pltpu.PrefetchScalarGridSpec(
            num_scalar_prefetch=0,
            grid=grid,
            in_specs=[
                pl.BlockSpec((tm, tk), lambda i, j, k: (i, k)),   # activations
                pl.BlockSpec((tk, tn), lambda i, j, k: (k, j)),   # weights
                pl.BlockSpec((1, tn), lambda i, j, k: (0, j)),    # bias
            ],
            out_specs=pl.BlockSpec((tm, tn), lambda i, j, k: (i, j)),
            scratch_shapes=[pltpu.VMEM((tm, tn), jnp.float32)],
        ),
        compiler_params=pltpu.CompilerParams(
            dimension_semantics=("parallel", "parallel", "arbitrary")),
    )(x, w_t, bias.reshape(1, N))

    if m_pad != m:
        out = out[:m]
    return out.reshape(out_shape)


def bert_intermediate_reference(hidden_states, w_t, bias):
    y = jnp.einsum("...k,kn->...n", hidden_states, w_t,
                   precision=jax.lax.Precision.HIGHEST) + bias
    return y * 0.5 * (1.0 + jax.scipy.special.erf(y * _INV_SQRT2))


if __name__ == "__main__":
    B, S = 2, 8                   # small batch/seq; feature dims fixed by the module
    K, N = 768, 3072              # nn.Linear(768, 3072)

    key = jax.random.PRNGKey(0)
    k_x, k_w, k_b = jax.random.split(key, 3)
    x = jax.random.normal(k_x, (B, S, K), dtype=jnp.float32)
    # Parameters stored pre-transposed (K, N): identical math to torch's
    # x @ weight.T with weight of shape (N, K).
    w_t = 0.02 * jax.random.normal(k_w, (K, N), dtype=jnp.float32)
    bias = 0.02 * jax.random.normal(k_b, (N,), dtype=jnp.float32)

    out = bert_intermediate_forward(x, w_t, bias)
    out = jax.block_until_ready(out)

    ref = bert_intermediate_reference(x, w_t, bias)
    assert out.shape == (B, S, N), out.shape
    err = float(jnp.max(jnp.abs(out - ref)))
    # Tolerance covers the MXU's reduced-precision f32 matmul path.
    assert err < 2e-2, err
    print("KERNEL_OK")
</pallas_src>

<mosaic_0001>
module attributes {stable_mosaic.version = 11 : i64} {
  func.func @_bert_intermediate_kernel(%arg0: i32, %arg1: i32, %arg2: i32, %arg3: memref<16x256xf32, #tpu.memory_space<vmem>>, %arg4: memref<256x512xf32, #tpu.memory_space<vmem>>, %arg5: memref<1x512xf32, #tpu.memory_space<vmem>>, %arg6: memref<16x512xf32, #tpu.memory_space<vmem>>, %arg7: memref<16x512xf32, #tpu.memory_space<vmem>>) attributes {dimension_semantics = [#tpu.dimension_semantics<parallel>, #tpu.dimension_semantics<parallel>, #tpu.dimension_semantics<arbitrary>], iteration_bounds = array<i64: 1, 6, 3>, scalar_prefetch = 0 : i64, scratch_operands = 1 : i64, tpu.core_type = #tpu.core_type<tc>, window_params = [{transform_indices = @transform_0, window_bounds = array<i64: 16, 256>}, {transform_indices = @transform_1, window_bounds = array<i64: 256, 512>}, {transform_indices = @transform_2, window_bounds = array<i64: 1, 512>}, {transform_indices = @transform_3, window_bounds = array<i64: 16, 512>}]} {
    %c0_i32 = arith.constant 0 : i32
    %0 = arith.cmpi eq, %arg2, %c0_i32 : i32
    %1 = arith.extui %0 : i1 to i32
    %c0_i32_0 = arith.constant 0 : i32
    %2 = arith.cmpi ne, %1, %c0_i32_0 : i32
    scf.if %2 {
      %cst_9 = arith.constant 0.000000e+00 : f32
      %12 = vector.broadcast %cst_9 : f32 to vector<16x512xf32>
      %c0_10 = arith.constant 0 : index
      %c0_11 = arith.constant 0 : index
      %13 = vector.load %arg7[%c0_10, %c0_11] : memref<16x512xf32, #tpu.memory_space<vmem>>, vector<16x512xf32>
      tpu.vector_store %arg7[%c0_10, %c0_11], %12 {strides = array<i32>} : memref<16x512xf32, #tpu.memory_space<vmem>>, vector<16x512xf32>,
    } else {
    }
    %c0 = arith.constant 0 : index
    %c0_1 = arith.constant 0 : index
    %3 = vector.load %arg7[%c0, %c0_1] : memref<16x512xf32, #tpu.memory_space<vmem>>, vector<16x512xf32>
    %c0_2 = arith.constant 0 : index
    %c0_3 = arith.constant 0 : index
    %4 = vector.load %arg3[%c0_2, %c0_3] : memref<16x256xf32, #tpu.memory_space<vmem>>, vector<16x256xf32>
    %c0_4 = arith.constant 0 : index
    %c0_5 = arith.constant 0 : index
    %5 = vector.load %arg4[%c0_4, %c0_5] : memref<256x512xf32, #tpu.memory_space<vmem>>, vector<256x512xf32>
    %cst = arith.constant dense<0.000000e+00> : vector<16x512xf32>
    %6 = tpu.matmul %4, %5, %cst {dimension_numbers = #tpu.dot_dimension_numbers<[1], [0], [0], [1], [0, 0, 1, 1], [], []>} : vector<16x256xf32>, vector<256x512xf32>, vector<16x512xf32> -> vector<16x512xf32>
    %7 = arith.addf %3, %6 : vector<16x512xf32>
    %c0_6 = arith.constant 0 : index
    %c0_7 = arith.constant 0 : index
    %8 = vector.load %arg7[%c0_6, %c0_7] : memref<16x512xf32, #tpu.memory_space<vmem>>, vector<16x512xf32>
    tpu.vector_store %arg7[%c0_6, %c0_7], %7 {strides = array<i32>} : memref<16x512xf32, #tpu.memory_space<vmem>>, vector<16x512xf32>,
    %c2_i32 = arith.constant 2 : i32
    %9 = arith.cmpi eq, %arg2, %c2_i32 : i32
    %10 = arith.extui %9 : i1 to i32
    %c0_i32_8 = arith.constant 0 : i32
    %11 = arith.cmpi ne, %10, %c0_i32_8 : i32
    scf.if %11 {
      %c0_9 = arith.constant 0 : index
      %c0_10 = arith.constant 0 : index
      %12 = vector.load %arg7[%c0_9, %c0_10] : memref<16x512xf32, #tpu.memory_space<vmem>>, vector<16x512xf32>
      %c0_11 = arith.constant 0 : index
      %c0_12 = arith.constant 0 : index
      %13 = vector.load %arg5[%c0_11, %c0_12] : memref<1x512xf32, #tpu.memory_space<vmem>>, vector<1x512xf32>
      %14 = vector.broadcast %13 : vector<1x512xf32> to vector<16x512xf32>
      %15 = arith.addf %12, %14 : vector<16x512xf32>
      %cst_13 = arith.constant 5.000000e-01 : f32
      %16 = vector.broadcast %cst_13 : f32 to vector<16x512xf32>
      %17 = arith.mulf %15, %16 : vector<16x512xf32>
      %cst_14 = arith.constant 0.707106769 : f32
      %18 = vector.broadcast %cst_14 : f32 to vector<16x512xf32>
      %19 = arith.mulf %15, %18 : vector<16x512xf32>
      %20 = math.absf %19 : vector<16x512xf32>
      %cst_15 = arith.constant 0.327591091 : f32
      %21 = vector.broadcast %cst_15 : f32 to vector<16x512xf32>
      %22 = arith.mulf %21, %20 : vector<16x512xf32>
      %cst_16 = arith.constant 1.000000e+00 : f32
      %23 = vector.broadcast %cst_16 : f32 to vector<16x512xf32>
      %24 = arith.addf %23, %22 : vector<16x512xf32>
      %cst_17 = arith.constant 1.000000e+00 : f32
      %25 = vector.broadcast %cst_17 : f32 to vector<16x512xf32>
      %26 = arith.divf %25, %24 : vector<16x512xf32>
      %cst_18 = arith.constant 1.06140542 : f32
      %27 = vector.broadcast %cst_18 : f32 to vector<16x512xf32>
      %28 = arith.mulf %26, %27 : vector<16x512xf32>
      %cst_19 = arith.constant -1.45315206 : f32
      %29 = vector.broadcast %cst_19 : f32 to vector<16x512xf32>
      %30 = arith.addf %29, %28 : vector<16x512xf32>
      %31 = arith.mulf %26, %30 : vector<16x512xf32>
      %cst_20 = arith.constant 1.42141378 : f32
      %32 = vector.broadcast %cst_20 : f32 to vector<16x512xf32>
      %33 = arith.addf %32, %31 : vector<16x512xf32>
      %34 = arith.mulf %26, %33 : vector<16x512xf32>
      %cst_21 = arith.constant -0.284496725 : f32
      %35 = vector.broadcast %cst_21 : f32 to vector<16x512xf32>
      %36 = arith.addf %35, %34 : vector<16x512xf32>
      %37 = arith.mulf %26, %36 : vector<16x512xf32>
      %cst_22 = arith.constant 0.254829586 : f32
      %38 = vector.broadcast %cst_22 : f32 to vector<16x512xf32>
      %39 = arith.addf %38, %37 : vector<16x512xf32>
      %40 = arith.mulf %26, %39 : vector<16x512xf32>
      %cst_23 = arith.constant 0.000000e+00 : f32
      %41 = vector.broadcast %cst_23 : f32 to vector<16x512xf32>
      %42 = arith.subf %41, %20 : vector<16x512xf32>
      %43 = arith.mulf %42, %20 : vector<16x512xf32>
      %44 = math.exp %43 : vector<16x512xf32>
      %45 = arith.mulf %40, %44 : vector<16x512xf32>
      %cst_24 = arith.constant 1.000000e+00 : f32
      %46 = vector.broadcast %cst_24 : f32 to vector<16x512xf32>
      %47 = arith.subf %46, %45 : vector<16x512xf32>
      %cst_25 = arith.constant 0.000000e+00 : f32
      %48 = vector.broadcast %cst_25 : f32 to vector<16x512xf32>
      %49 = arith.cmpf olt, %19, %48 : vector<16x512xf32>
      %cst_26 = arith.constant 0.000000e+00 : f32
      %50 = vector.broadcast %cst_26 : f32 to vector<16x512xf32>
      %51 = arith.subf %50, %47 : vector<16x512xf32>
      %52 = arith.select %49, %51, %47 : vector<16x512xi1>, vector<16x512xf32>
      %cst_27 = arith.constant 1.000000e+00 : f32
      %53 = vector.broadcast %cst_27 : f32 to vector<16x512xf32>
      %54 = arith.addf %53, %52 : vector<16x512xf32>
      %55 = arith.mulf %17, %54 : vector<16x512xf32>
      %c0_28 = arith.constant 0 : index
      %c0_29 = arith.constant 0 : index
      %56 = vector.load %arg6[%c0_28, %c0_29] : memref<16x512xf32, #tpu.memory_space<vmem>>, vector<16x512xf32>
      tpu.vector_store %arg6[%c0_28, %c0_29], %55 {strides = array<i32>} : memref<16x512xf32, #tpu.memory_space<vmem>>, vector<16x512xf32>,
    } else {
    }
    return
  }
  func.func @transform_0(%arg0: i32, %arg1: i32, %arg2: i32) -> (i32, i32) {
    %c0_i32 = arith.constant 0 : i32
    return %arg0, %arg2 : i32, i32
  }
  func.func @transform_1(%arg0: i32, %arg1: i32, %arg2: i32) -> (i32, i32) {
    %c0_i32 = arith.constant 0 : i32
    return %arg2, %arg1 : i32, i32
  }
  func.func @transform_2(%arg0: i32, %arg1: i32, %arg2: i32) -> (i32, i32) {
    %c0_i32 = arith.constant 0 : i32
    %c0_i32_0 = arith.constant 0 : i32
    return %c0_i32, %arg1 : i32, i32
  }
  func.func @transform_3(%arg0: i32, %arg1: i32, %arg2: i32) -> (i32, i32) {
    %c0_i32 = arith.constant 0 : i32
    return %arg0, %arg1 : i32, i32
  }
}

</mosaic_0001>

<llo_original>
// kernel: tpu_custom_call.1
$region0: #{tpu_custom_call.1}
  #allocation0 [shape = 'u32[]', space=smem, size = 0x4, offset = 0x4, fixed_abs, tag = 'smem constant byte address 0x4 - core index']
  #allocation1 [shape = 'u32[144,128]{1,0:T(1,128)}', space=vmem, size = 0x12000, scoped, tag = 'internal scratch']
  #allocation2 [shape = 'f32[16,512]{1,0:T(8,128)}', space=vmem, size = 0x8000, scoped, tag = 'scratch operand']
  %s0 = inlined_call_operand.hbm [shape: f32[16,768], index: 0, kind: input, shape index: {}]
  %s1 = inlined_call_operand.hbm [shape: f32[768,3072], index: 1, kind: input, shape index: {}]
  %s2 = inlined_call_operand.hbm [shape: f32[1,3072], index: 2, kind: input, shape index: {}]
  %s3 = inlined_call_operand.hbm [shape: f32[16,3072], index: 3, kind: output, shape index: {}]
  %s4 = sld [smem:[#allocation0]]
  $region65: #{tpu_custom_call.1} parent=0
    _
  %s6 = ssub.s32 1, %s4
  %s7 = scalar_select 0, %s6, %s4
  $region1: #{tpu_custom_call.1} parent=0
    #allocation3 [shape = 'u8[32768]{0}', space=vmem, size = 0x8000, scoped, tag = 'input window, operand 0']
    #allocation4 [shape = 's32[2]{0}', space=sflag, size = 0x8, scoped, tag = 'scoped memory for tpu_custom_call.1']
    #allocation5 [shape = 's32[2]{0}', space=sflag, size = 0x8, scoped, tag = 'scoped memory for tpu_custom_call.1']
    #allocation6 [shape = 'u8[1048576]{0}', space=vmem, size = 0x100000, scoped, tag = 'input window, operand 1']
    #allocation7 [shape = 's32[2]{0}', space=sflag, size = 0x8, scoped, tag = 'scoped memory for tpu_custom_call.1']
    #allocation8 [shape = 'u8[4096]{0}', space=vmem, size = 0x1000, scoped, tag = 'input window, operand 2']
    #allocation9 [shape = 'u8[65536]{0}', space=vmem, size = 0x10000, scoped, tag = 'output window, operand 0']
    %8 = vsyncpa [#allocation4], 0
    %s9 = scalar_lea.sflag [#allocation4], 1
    %10 = vsyncpa %s9, 0
    %11 = vsyncpa [#allocation7], 0
    %s12 = scalar_lea.sflag [#allocation7], 1
    %13 = vsyncpa %s12, 0
    %14 = vsyncpa [#allocation5], 0
    %s15 = scalar_lea.sflag [#allocation5], 1
    %16 = vsyncpa %s15, 0
    loop: start=0, step=1, limit=20
    $region2: #{tpu_custom_call.1} parent=1 // loop_pre_header
      _
    $region3: #{tpu_custom_call.1} parent=1 // loop_header
      %s18 = sphi 0, %s22
      %p19 = scmp.ge.s32.totalorder %s18, 20
      %s25 = sphi 0, %s44
      %s26 = sphi 0, %s40
      %s27 = sphi 0, %s36
      %s28 = sphi 0, %s25
      %s29 = sphi 0, %s26
      %s30 = sphi 0, %s27
      %s31 = sphi 0, %s28
      %s32 = sphi 0, %s29
      %s33 = sphi 0, %s30
      %s49 = sphi 0, %s51
      %s52 = sphi 0, %s49
      %s53 = sphi 0, %s52
      %s69 = sphi 0, %s53
      %s77 = sphi 0, %s79
      %s80 = sphi 0, %s77
      %s81 = sphi 0, %s80
      %s97 = sphi 0, %s81
      %s103 = sphi 0, %s105
      %s106 = sphi 0, %s103
      %s107 = sphi 0, %s106
      %s123 = sphi 0, %s107
      %s131 = sphi 0, %s133
      %s134 = sphi 0, %s131
      %s135 = sphi 0, %s134
      %s151 = sphi 0, %s135
    $region4: #{tpu_custom_call.1} parent=1 // loop_header_branch
      %21 = sbr.rel (%p19) target = $region8
    $region5: #{tpu_custom_call.1} parent=1 // loop_body
      %s23 = ssub.s32 %s18, 1
      %s24 = ssub.s32 %s18, 2
      %s34 = sadd.s32 1, %s27
      %p35 = scmp.ge.s32.totalorder %s34, 3
      %s36 = scalar_select %p35, 0, %s34
      %s37 = sadd.s32 1, %s26
      %s38 = scalar_select %p35, %s37, %s26
      %p39 = scmp.ge.s32.totalorder %s38, 6
      %s40 = scalar_select %p39, 0, %s38
      %s41 = sadd.s32 1, %s25
      %s42 = scalar_select %p39, %s41, %s25
      %p43 = scmp.ge.s32.totalorder %s42, 1
      %s44 = scalar_select %p43, 0, %s42
      %s45 = ssub.s32 %s25, %s44
      %s46 = ssub.s32 %s27, %s36
      %s47 = sor.u32 %s45, %s46
      %p48 = scmp.eq.s32.totalorder %s47, 0
      %s50 = sadd.s32 %s49, 1
      %s51 = scalar_select %p48, %s49, %s50
      %p54 = pneg %p48
      %p55 = scmp.eq.s32.totalorder %s18, 17
      %p56 = por %p54, %p55
      %p57 = scmp.ne.s32.totalorder %s49, %s52
      %p58 = scmp.eq.s32.totalorder %s18, 0
      %p59 = por %p57, %p58
      %p60 = scmp.ne.s32.totalorder %s49, %s52
      %p61 = scmp.eq.s32.totalorder %s23, 17
      %p62 = por %p60, %p61
      %p63 = scmp.ne.s32.totalorder %s52, %s53
      %p64 = scmp.eq.s32.totalorder %s23, 0
      %p65 = por %p63, %p64
      %p66 = scmp.ne.s32.totalorder %s52, %s53
      %p67 = scmp.eq.s32.totalorder %s24, 17
      %p68 = por %p66, %p67
      %p70 = scmp.ne.s32.totalorder %s53, %s69
      %p71 = scmp.eq.s32.totalorder %s24, 0
      %p72 = por %p70, %p71
      %s73 = ssub.s32 %s27, %s36
      %s74 = ssub.s32 %s26, %s40
      %s75 = sor.u32 %s73, %s74
      %p76 = scmp.eq.s32.totalorder %s75, 0
      %s78 = sadd.s32 %s77, 1
      %s79 = scalar_select %p76, %s77, %s78
      %p82 = pneg %p76
      %p83 = scmp.eq.s32.totalorder %s18, 17
      %p84 = por %p82, %p83
      %p85 = scmp.ne.s32.totalorder %s77, %s80
      %p86 = scmp.eq.s32.totalorder %s18, 0
      %p87 = por %p85, %p86
      %p88 = scmp.ne.s32.totalorder %s77, %s80
      %p89 = scmp.eq.s32.totalorder %s23, 17
      %p90 = por %p88, %p89
      %p91 = scmp.ne.s32.totalorder %s80, %s81
      %p92 = scmp.eq.s32.totalorder %s23, 0
      %p93 = por %p91, %p92
      %p94 = scmp.ne.s32.totalorder %s80, %s81
      %p95 = scmp.eq.s32.totalorder %s24, 17
      %p96 = por %p94, %p95
      %p98 = scmp.ne.s32.totalorder %s81, %s97
      %p99 = scmp.eq.s32.totalorder %s24, 0
      %p100 = por %p98, %p99
      %s101 = ssub.s32 %s26, %s40
      %p102 = scmp.eq.s32.totalorder %s101, 0
      %s104 = sadd.s32 %s103, 1
      %s105 = scalar_select %p102, %s103, %s104
      %p108 = pneg %p102
      %p109 = scmp.eq.s32.totalorder %s18, 17
      %p110 = por %p108, %p109
      %p111 = scmp.ne.s32.totalorder %s103, %s106
      %p112 = scmp.eq.s32.totalorder %s18, 0
      %p113 = por %p111, %p112
      %p114 = scmp.ne.s32.totalorder %s103, %s106
      %p115 = scmp.eq.s32.totalorder %s23, 17
      %p116 = por %p114, %p115
      %p117 = scmp.ne.s32.totalorder %s106, %s107
      %p118 = scmp.eq.s32.totalorder %s23, 0
      %p119 = por %p117, %p118
      %p120 = scmp.ne.s32.totalorder %s106, %s107
      %p121 = scmp.eq.s32.totalorder %s24, 17
      %p122 = por %p120, %p121
      %p124 = scmp.ne.s32.totalorder %s107, %s123
      %p125 = scmp.eq.s32.totalorder %s24, 0
      %p126 = por %p124, %p125
      %s127 = ssub.s32 %s25, %s44
      %s128 = ssub.s32 %s26, %s40
      %s129 = sor.u32 %s127, %s128
      %p130 = scmp.eq.s32.totalorder %s129, 0
      %s132 = sadd.s32 %s131, 1
      %s133 = scalar_select %p130, %s131, %s132
      %p136 = pneg %p130
      %p137 = scmp.eq.s32.totalorder %s18, 17
      %p138 = por %p136, %p137
      %p139 = scmp.ne.s32.totalorder %s131, %s134
      %p140 = scmp.eq.s32.totalorder %s18, 0
      %p141 = por %p139, %p140
      %p142 = scmp.ne.s32.totalorder %s131, %s134
      %p143 = scmp.eq.s32.totalorder %s23, 17
      %p144 = por %p142, %p143
      %p145 = scmp.ne.s32.totalorder %s134, %s135
      %p146 = scmp.eq.s32.totalorder %s23, 0
      %p147 = por %p145, %p146
      %p148 = scmp.ne.s32.totalorder %s134, %s135
      %p149 = scmp.eq.s32.totalorder %s24, 17
      %p150 = por %p148, %p149
      %p152 = scmp.ne.s32.totalorder %s135, %s151
      %p153 = scmp.eq.s32.totalorder %s24, 0
      %p154 = por %p152, %p153
      %p155 = scmp.le.s32.totalorder 1, %s18
      %p156 = scmp.lt.s32.totalorder %s18, 19
      %p157 = pnand %p155, %p156
      %p158 = pneg %p157
      // Predicated region
      $region9: #{tpu_custom_call.1} parent=5 // pred_check
        _
      $region10: #{tpu_custom_call.1} parent=5 // pred_check_branch
        %160 = sbr.rel (%p157) target = $region12
      $region11: #{tpu_custom_call.1} parent=5 // pred_region
        %s161 = ssub.s32 %s18, 1
      $region12: #{tpu_custom_call.1} parent=5 // pred_fallthru
        _
      %p162 = scmp.lt.s32.totalorder %s18, 18
      // Predicated region
      $region13: #{tpu_custom_call.1} parent=5 // pred_check
        %p163 = pneg %p162
      $region14: #{tpu_custom_call.1} parent=5 // pred_check_branch
        %165 = sbr.rel (%p163) target = $region16
      $region15: #{tpu_custom_call.1} parent=5 // pred_region
        // Predicated region
        $region17: #{tpu_custom_call.1} parent=15 // pred_check
          %p166 = pneg %p59
        $region18: #{tpu_custom_call.1} parent=15 // pred_check_branch
          %168 = sbr.rel (%p166) target = $region20
        $region19: #{tpu_custom_call.1} parent=15 // pred_region
          %s169 = sand.u32 %s49, 1
          %s170 = scalar_lea.sflag [#allocation4], %s169
          %s171 = sand.u32 %s49, 1
          %s172 = smul.addr %s171, 32
          %s173 = scalar_lea.vmem [#allocation3], %s172
          %s174 = smul.u32 2, %s25
          %s175 = smul.u32 2, %s27
          %s177 = ssub.s32 512, 512
          %178 = vsyncadd %s170, %s177
          %s179 = smul.addr %s174, 6
          %s180 = sadd.s32 %s175, %s179
          %s181 = smul.addr %s180, 128
          %s182 = scalar_lea.hbm %s0, %s181
          %s183 = sshll.u32 %s173, 4
          %s184 = int_to_ptr.vmem [resolvable:$true] %s183
          %189 = dma.hbm_to_vmem [thread:$0]  %s182, 512, %s184, %s170, 768, 256, 16
        $region20: #{tpu_custom_call.1} parent=15 // pred_fallthru
          _
        // Predicated region
        $region21: #{tpu_custom_call.1} parent=15 // pred_check
          %p190 = pneg %p87
        $region22: #{tpu_custom_call.1} parent=15 // pred_check_branch
          %192 = sbr.rel (%p190) target = $region24
        $region23: #{tpu_custom_call.1} parent=15 // pred_region
          %s193 = sand.u32 %s18, 1
          %s194 = scalar_lea.sflag [#allocation7], %s193
          %s195 = sand.u32 %s77, 1
          %s196 = smul.addr %s195, 1024
          %s197 = scalar_lea.vmem [#allocation6], %s196
          %s198 = smul.u32 32, %s27
          %s199 = smul.u32 4, %s26
          %s201 = ssub.s32 16384, 16384
          %202 = vsyncadd %s194, %s201
          %s203 = smul.addr %s198, 24
          %s204 = sadd.s32 %s199, %s203
          %s205 = smul.addr %s204, 128
          %s206 = scalar_lea.hbm %s1, %s205
          %s207 = sshll.u32 %s197, 4
          %s208 = int_to_ptr.vmem [resolvable:$true] %s207
          %213 = dma.hbm_to_vmem [thread:$0]  %s206, 16384, %s208, %s194, 3072, 512, 32
        $region24: #{tpu_custom_call.1} parent=15 // pred_fallthru
          _
        // Predicated region
        $region25: #{tpu_custom_call.1} parent=15 // pred_check
          %p214 = pneg %p113
        $region26: #{tpu_custom_call.1} parent=15 // pred_check_branch
          %216 = sbr.rel (%p214) target = $region28
        $region27: #{tpu_custom_call.1} parent=15 // pred_region
          %s217 = sand.u32 %s18, 1
          %s218 = scalar_lea.sflag [#allocation7], %s217
          %s219 = sand.u32 %s103, 1
          %s220 = smul.addr %s219, 4
          %s221 = scalar_lea.vmem [#allocation8], %s220
          %s222 = smul.u32 4, %s26
          %s224 = ssub.s32 64, 64
          %225 = vsyncadd %s218, %s224
          %s226 = smul.addr %s222, 16
          %s227 = scalar_lea.hbm %s2, %s226
          %s229 = sshll.u32 %s221, 4
          %s230 = int_to_ptr.vmem [resolvable:$true] %s229
          %232 = dma.hbm_to_vmem [thread:$0]  %s227, 64, %s230, %s218
        $region28: #{tpu_custom_call.1} parent=15 // pred_fallthru
          _
      $region16: #{tpu_custom_call.1} parent=5 // pred_fallthru
        _
      %p233 = scmp.le.s32.totalorder 1, %s18
      %p234 = scmp.lt.s32.totalorder %s18, 19
      %p235 = pnand %p233, %p234
      %p236 = pneg %p235
      // Predicated region
      $region29: #{tpu_custom_call.1} parent=5 // pred_check
        _
      $region30: #{tpu_custom_call.1} parent=5 // pred_check_branch
        %238 = sbr.rel (%p235) target = $region32
      $region31: #{tpu_custom_call.1} parent=5 // pred_region
        %s239 = ssub.s32 %s18, 1
        %s240 = sand.u32 %s52, 1
        %s241 = scalar_lea.sflag [#allocation4], %s240
        %s242 = sand.u32 %s52, 1
        %s243 = smul.addr %s242, 32
        %s244 = scalar_lea.vmem [#allocation3], %s243
        // Predicated region
        $region33: #{tpu_custom_call.1} parent=31 // pred_check
          %p245 = pneg %p65
        $region34: #{tpu_custom_call.1} parent=31 // pred_check_branch
          %247 = sbr.rel (%p245) target = $region36
        $region35: #{tpu_custom_call.1} parent=31 // pred_region
          %248 = dma.done %s241, 512
        $region36: #{tpu_custom_call.1} parent=31 // pred_fallthru
          _
        %s249 = sand.u32 %s23, 1
        %s250 = scalar_lea.sflag [#allocation7], %s249
        %s251 = sand.u32 %s80, 1
        %s252 = smul.addr %s251, 1024
        %s253 = scalar_lea.vmem [#allocation6], %s252
        // Predicated region
        $region37: #{tpu_custom_call.1} parent=31 // pred_check
          %p254 = pneg %p93
        $region38: #{tpu_custom_call.1} parent=31 // pred_check_branch
          %256 = sbr.rel (%p254) target = $region40
        $region39: #{tpu_custom_call.1} parent=31 // pred_region
          %257 = dma.done %s250, 16384
        $region40: #{tpu_custom_call.1} parent=31 // pred_fallthru
          _
        %s258 = sand.u32 %s23, 1
        %s259 = scalar_lea.sflag [#allocation7], %s258
        %s260 = sand.u32 %s106, 1
        %s261 = smul.addr %s260, 4
        %s262 = scalar_lea.vmem [#allocation8], %s261
        // Predicated region
        $region41: #{tpu_custom_call.1} parent=31 // pred_check
          %p263 = pneg %p119
        $region42: #{tpu_custom_call.1} parent=31 // pred_check_branch
          %265 = sbr.rel (%p263) target = $region44
        $region43: #{tpu_custom_call.1} parent=31 // pred_region
          %266 = dma.done %s259, 64
        $region44: #{tpu_custom_call.1} parent=31 // pred_fallthru
          _
        %s267 = sand.u32 %s52, 1
        %s268 = scalar_lea.sflag [#allocation4], %s267
        %s269 = sand.u32 %s52, 1
        %s270 = smul.addr %s269, 32
        %s271 = scalar_lea.vmem [#allocation3], %s270
        %p272 = pneg %p65
        %p273 = pneg %p62
        %s274 = sand.u32 %s23, 1
        %s275 = scalar_lea.sflag [#allocation7], %s274
        %s276 = sand.u32 %s80, 1
        %s277 = smul.addr %s276, 1024
        %s278 = scalar_lea.vmem [#allocation6], %s277
        %p279 = pneg %p93
        %p280 = pneg %p90
        %s281 = sand.u32 %s23, 1
        %s282 = scalar_lea.sflag [#allocation7], %s281
        %s283 = sand.u32 %s106, 1
        %s284 = smul.addr %s283, 4
        %s285 = scalar_lea.vmem [#allocation8], %s284
        %p286 = pneg %p119
        %p287 = pneg %p116
        %p288 = pneg %p147
        %p289 = pneg %p144
        %s290 = sand.u32 %s134, 1
        %s291 = scalar_lea.sflag [#allocation5], %s290
        %s292 = sand.u32 %s134, 1
        %s293 = smul.addr %s292, 64
        %s294 = scalar_lea.vmem [#allocation9], %s293
        %s295 = smul.u32 2, %s28
        %s296 = smul.u32 2, %s30
        %s297 = smul.u32 32, %s30
        %s298 = smul.u32 4, %s29
        %s299 = smul.u32 4, %s29
        %s300 = smul.u32 2, %s28
        %s301 = smul.u32 4, %s29
        %p302 = scmp.eq.s32.totalorder %s30, 0
        // Predicated region
        $region45: #{tpu_custom_call.1} parent=31 // pred_check
          %p303 = pneg %p302
        $region46: #{tpu_custom_call.1} parent=31 // pred_check_branch
          %305 = sbr.rel (%p303) target = $region48
        $region47: #{tpu_custom_call.1} parent=31 // pred_region
          %306 = vst [vmem:[#allocation2] sm:$0xff] 0.0
          %307 = vst [vmem:[#allocation2 + $0x8] sm:$0xff] 0.0
          %308 = vst [vmem:[#allocation2 + $0x10] sm:$0xff] 0.0
          %309 = vst [vmem:[#allocation2 + $0x18] sm:$0xff] 0.0
          %310 = vst [vmem:[#allocation2 + $0x20] sm:$0xff] 0.0
          %311 = vst [vmem:[#allocation2 + $0x28] sm:$0xff] 0.0
          %312 = vst [vmem:[#allocation2 + $0x30] sm:$0xff] 0.0
          %313 = vst [vmem:[#allocation2 + $0x38] sm:$0xff] 0.0
        $region48: #{tpu_custom_call.1} parent=31 // pred_fallthru
          _
        %v314 = vld [vmem:[#allocation2] sm:$0xff]
        %v315 = vld [vmem:[#allocation2 + $0x8] sm:$0xff]
        %v316 = vld [vmem:[#allocation2 + $0x10] sm:$0xff]
        %v317 = vld [vmem:[#allocation2 + $0x18] sm:$0xff]
        %v318 = vld [vmem:[#allocation2 + $0x20] sm:$0xff]
        %v319 = vld [vmem:[#allocation2 + $0x28] sm:$0xff]
        %v320 = vld [vmem:[#allocation2 + $0x30] sm:$0xff]
        %v321 = vld [vmem:[#allocation2 + $0x38] sm:$0xff]
        %v322 = vld [vmem:[%s244] sm:$0xff]
        %v323 = vld [vmem:[%s244 + $0x8] sm:$0xff]
        %v324 = vld [vmem:[%s244 + $0x10] sm:$0xff]
        %v325 = vld [vmem:[%s244 + $0x18] sm:$0xff]
        %v326 = vld [vmem:[%s253] sm:$0xff]
        %v327 = vld [vmem:[%s253 + $0x8] sm:$0xff]
        %v328 = vld [vmem:[%s253 + $0x10] sm:$0xff]
        %v329 = vld [vmem:[%s253 + $0x18] sm:$0xff]
        %v330 = vld [vmem:[%s253 + $0x20] sm:$0xff]
        %v331 = vld [vmem:[%s253 + $0x28] sm:$0xff]
        %v332 = vld [vmem:[%s253 + $0x30] sm:$0xff]
        %v333 = vld [vmem:[%s253 + $0x38] sm:$0xff]
        %v334 = vld [vmem:[%s253 + $0x40] sm:$0xff]
        %v335 = vld [vmem:[%s253 + $0x48] sm:$0xff]
        %v336 = vld [vmem:[%s253 + $0x50] sm:$0xff]
        %v337 = vld [vmem:[%s253 + $0x58] sm:$0xff]
        %v338 = vld [vmem:[%s253 + $0x60] sm:$0xff]
        %v339 = vld [vmem:[%s253 + $0x68] sm:$0xff]
        %v340 = vld [vmem:[%s253 + $0x70] sm:$0xff]
        %v341 = vld [vmem:[%s253 + $0x78] sm:$0xff]
        %v342 = vld [vmem:[%s253 + $0x80] sm:$0xff]
        %v343 = vld [vmem:[%s253 + $0x88] sm:$0xff]
        %v344 = vld [vmem:[%s253 + $0x90] sm:$0xff]
        %v345 = vld [vmem:[%s253 + $0x98] sm:$0xff]
        %v346 = vld [vmem:[%s253 + $0xa0] sm:$0xff]
        %v347 = vld [vmem:[%s253 + $0xa8] sm:$0xff]
        %v348 = vld [vmem:[%s253 + $0xb0] sm:$0xff]
        %v349 = vld [vmem:[%s253 + $0xb8] sm:$0xff]
        %v350 = vld [vmem:[%s253 + $0xc0] sm:$0xff]
        %v351 = vld [vmem:[%s253 + $0xc8] sm:$0xff]
        %v352 = vld [vmem:[%s253 + $0xd0] sm:$0xff]
        %v353 = vld [vmem:[%s253 + $0xd8] sm:$0xff]
        %v354 = vld [vmem:[%s253 + $0xe0] sm:$0xff]
        %v355 = vld [vmem:[%s253 + $0xe8] sm:$0xff]
        %v356 = vld [vmem:[%s253 + $0xf0] sm:$0xff]
        %v357 = vld [vmem:[%s253 + $0xf8] sm:$0xff]
        %v358 = vld [vmem:[%s253 + $0x100] sm:$0xff]
        %v359 = vld [vmem:[%s253 + $0x108] sm:$0xff]
        %v360 = vld [vmem:[%s253 + $0x110] sm:$0xff]
        %v361 = vld [vmem:[%s253 + $0x118] sm:$0xff]
        %v362 = vld [vmem:[%s253 + $0x120] sm:$0xff]
        %v363 = vld [vmem:[%s253 + $0x128] sm:$0xff]
        %v364 = vld [vmem:[%s253 + $0x130] sm:$0xff]
        %v365 = vld [vmem:[%s253 + $0x138] sm:$0xff]
        %v366 = vld [vmem:[%s253 + $0x140] sm:$0xff]
        %v367 = vld [vmem:[%s253 + $0x148] sm:$0xff]
        %v368 = vld [vmem:[%s253 + $0x150] sm:$0xff]
        %v369 = vld [vmem:[%s253 + $0x158] sm:$0xff]
        %v370 = vld [vmem:[%s253 + $0x160] sm:$0xff]
        %v371 = vld [vmem:[%s253 + $0x168] sm:$0xff]
        %v372 = vld [vmem:[%s253 + $0x170] sm:$0xff]
        %v373 = vld [vmem:[%s253 + $0x178] sm:$0xff]
        %v374 = vld [vmem:[%s253 + $0x180] sm:$0xff]
        %v375 = vld [vmem:[%s253 + $0x188] sm:$0xff]
        %v376 = vld [vmem:[%s253 + $0x190] sm:$0xff]
        %v377 = vld [vmem:[%s253 + $0x198] sm:$0xff]
        %v378 = vld [vmem:[%s253 + $0x1a0] sm:$0xff]
        %v379 = vld [vmem:[%s253 + $0x1a8] sm:$0xff]
        %v380 = vld [vmem:[%s253 + $0x1b0] sm:$0xff]
        %v381 = vld [vmem:[%s253 + $0x1b8] sm:$0xff]
        %v382 = vld [vmem:[%s253 + $0x1c0] sm:$0xff]
        %v383 = vld [vmem:[%s253 + $0x1c8] sm:$0xff]
        %v384 = vld [vmem:[%s253 + $0x1d0] sm:$0xff]
        %v385 = vld [vmem:[%s253 + $0x1d8] sm:$0xff]
        %v386 = vld [vmem:[%s253 + $0x1e0] sm:$0xff]
        %v387 = vld [vmem:[%s253 + $0x1e8] sm:$0xff]
        %v388 = vld [vmem:[%s253 + $0x1f0] sm:$0xff]
        %v389 = vld [vmem:[%s253 + $0x1f8] sm:$0xff]
        %v390 = vld [vmem:[%s253 + $0x200] sm:$0xff]
        %v391 = vld [vmem:[%s253 + $0x208] sm:$0xff]
        %v392 = vld [vmem:[%s253 + $0x210] sm:$0xff]
        %v393 = vld [vmem:[%s253 + $0x218] sm:$0xff]
        %v394 = vld [vmem:[%s253 + $0x220] sm:$0xff]
        %v395 = vld [vmem:[%s253 + $0x228] sm:$0xff]
        %v396 = vld [vmem:[%s253 + $0x230] sm:$0xff]
        %v397 = vld [vmem:[%s253 + $0x238] sm:$0xff]
        %v398 = vld [vmem:[%s253 + $0x240] sm:$0xff]
        %v399 = vld [vmem:[%s253 + $0x248] sm:$0xff]
        %v400 = vld [vmem:[%s253 + $0x250] sm:$0xff]
        %v401 = vld [vmem:[%s253 + $0x258] sm:$0xff]
        %v402 = vld [vmem:[%s253 + $0x260] sm:$0xff]
        %v403 = vld [vmem:[%s253 + $0x268] sm:$0xff]
        %v404 = vld [vmem:[%s253 + $0x270] sm:$0xff]
        %v405 = vld [vmem:[%s253 + $0x278] sm:$0xff]
        %v406 = vld [vmem:[%s253 + $0x280] sm:$0xff]
        %v407 = vld [vmem:[%s253 + $0x288] sm:$0xff]
        %v408 = vld [vmem:[%s253 + $0x290] sm:$0xff]
        %v409 = vld [vmem:[%s253 + $0x298] sm:$0xff]
        %v410 = vld [vmem:[%s253 + $0x2a0] sm:$0xff]
        %v411 = vld [vmem:[%s253 + $0x2a8] sm:$0xff]
        %v412 = vld [vmem:[%s253 + $0x2b0] sm:$0xff]
        %v413 = vld [vmem:[%s253 + $0x2b8] sm:$0xff]
        %v414 = vld [vmem:[%s253 + $0x2c0] sm:$0xff]
        %v415 = vld [vmem:[%s253 + $0x2c8] sm:$0xff]
        %v416 = vld [vmem:[%s253 + $0x2d0] sm:$0xff]
        %v417 = vld [vmem:[%s253 + $0x2d8] sm:$0xff]
        %v418 = vld [vmem:[%s253 + $0x2e0] sm:$0xff]
        %v419 = vld [vmem:[%s253 + $0x2e8] sm:$0xff]
        %v420 = vld [vmem:[%s253 + $0x2f0] sm:$0xff]
        %v421 = vld [vmem:[%s253 + $0x2f8] sm:$0xff]
        %v422 = vld [vmem:[%s253 + $0x300] sm:$0xff]
        %v423 = vld [vmem:[%s253 + $0x308] sm:$0xff]
        %v424 = vld [vmem:[%s253 + $0x310] sm:$0xff]
        %v425 = vld [vmem:[%s253 + $0x318] sm:$0xff]
        %v426 = vld [vmem:[%s253 + $0x320] sm:$0xff]
        %v427 = vld [vmem:[%s253 + $0x328] sm:$0xff]
        %v428 = vld [vmem:[%s253 + $0x330] sm:$0xff]
        %v429 = vld [vmem:[%s253 + $0x338] sm:$0xff]
        %v430 = vld [vmem:[%s253 + $0x340] sm:$0xff]
        %v431 = vld [vmem:[%s253 + $0x348] sm:$0xff]
        %v432 = vld [vmem:[%s253 + $0x350] sm:$0xff]
        %v433 = vld [vmem:[%s253 + $0x358] sm:$0xff]
        %v434 = vld [vmem:[%s253 + $0x360] sm:$0xff]
        %v435 = vld [vmem:[%s253 + $0x368] sm:$0xff]
        %v436 = vld [vmem:[%s253 + $0x370] sm:$0xff]
        %v437 = vld [vmem:[%s253 + $0x378] sm:$0xff]
        %v438 = vld [vmem:[%s253 + $0x380] sm:$0xff]
        %v439 = vld [vmem:[%s253 + $0x388] sm:$0xff]
        %v440 = vld [vmem:[%s253 + $0x390] sm:$0xff]
        %v441 = vld [vmem:[%s253 + $0x398] sm:$0xff]
        %v442 = vld [vmem:[%s253 + $0x3a0] sm:$0xff]
        %v443 = vld [vmem:[%s253 + $0x3a8] sm:$0xff]
        %v444 = vld [vmem:[%s253 + $0x3b0] sm:$0xff]
        %v445 = vld [vmem:[%s253 + $0x3b8] sm:$0xff]
        %v446 = vld [vmem:[%s253 + $0x3c0] sm:$0xff]
        %v447 = vld [vmem:[%s253 + $0x3c8] sm:$0xff]
        %v448 = vld [vmem:[%s253 + $0x3d0] sm:$0xff]
        %v449 = vld [vmem:[%s253 + $0x3d8] sm:$0xff]
        %v450 = vld [vmem:[%s253 + $0x3e0] sm:$0xff]
        %v451 = vld [vmem:[%s253 + $0x3e8] sm:$0xff]
        %v452 = vld [vmem:[%s253 + $0x3f0] sm:$0xff]
        %v453 = vld [vmem:[%s253 + $0x3f8] sm:$0xff]
        %454 = vmatprep.subr.mxu0 %v387
        %455 = vmatpush1.msra.mxu0 %v386
        %456 = vmatprep.subr.mxu0 %v383
        %457 = vmatpush1.msra.mxu0 %v382
        %458 = vmatprep.subr.mxu0 %v379
        %459 = vmatpush1.msra.mxu0 %v378
        %460 = vmatprep.subr.mxu0 %v375
        %461 = vmatpush1.msra.mxu0 %v374
        %462 = vmatprep.subr.mxu0 %v371
        %463 = vmatpush1.msra.mxu0 %v370
        %464 = vmatprep.subr.mxu0 %v367
        %465 = vmatpush1.msra.mxu0 %v366
        %466 = vmatprep.subr.mxu0 %v363
        %467 = vmatpush1.msra.mxu0 %v362
        %468 = vmatprep.subr.mxu0 %v359
        %469 = vmatpush1.msra.mxu0 %v358
        %470 = vmatprep.subr.mxu0 %v355
        %471 = vmatpush1.msra.mxu0 %v354
        %472 = vmatprep.subr.mxu0 %v351
        %473 = vmatpush1.msra.mxu0 %v350
        %474 = vmatprep.subr.mxu0 %v347
        %475 = vmatpush1.msra.mxu0 %v346
        %476 = vmatprep.subr.mxu0 %v343
        %477 = vmatpush1.msra.mxu0 %v342
        %478 = vmatprep.subr.mxu0 %v339
        %479 = vmatpush1.msra.mxu0 %v338
        %480 = vmatprep.subr.mxu0 %v335
        %481 = vmatpush1.msra.mxu0 %v334
        %482 = vmatprep.subr.mxu0 %v331
        %483 = vmatpush1.msra.mxu0 %v330
        %484 = vmatprep.subr.mxu0 %v327
        %485 = vmatpush1.msra.mxu0 %v326
        %486 = vmatprep.subr.mxu0 %v451
        %487 = vmatpush2.msra.mxu0 %v450
        %488 = vmatprep.subr.mxu0 %v447
        %489 = vmatpush2.msra.mxu0 %v446
        %490 = vmatprep.subr.mxu0 %v443
        %491 = vmatpush2.msra.mxu0 %v442
        %492 = vmatprep.subr.mxu0 %v439
        %493 = vmatpush2.msra.mxu0 %v438
        %494 = vmatprep.subr.mxu0 %v435
        %495 = vmatpush2.msra.mxu0 %v434
        %496 = vmatprep.subr.mxu0 %v431
        %497 = vmatpush2.msra.mxu0 %v430
        %498 = vmatprep.subr.mxu0 %v427
        %499 = vmatpush2.msra.mxu0 %v426
        %500 = vmatprep.subr.mxu0 %v423
        %501 = vmatpush2.msra.mxu0 %v422
        %502 = vmatprep.subr.mxu0 %v419
        %503 = vmatpush2.msra.mxu0 %v418
        %504 = vmatprep.subr.mxu0 %v415
        %505 = vmatpush2.msra.mxu0 %v414
        %506 = vmatprep.subr.mxu0 %v411
        %507 = vmatpush2.msra.mxu0 %v410
        %508 = vmatprep.subr.mxu0 %v407
        %509 = vmatpush2.msra.mxu0 %v406
        %510 = vmatprep.subr.mxu0 %v403
        %511 = vmatpush2.msra.mxu0 %v402
        %512 = vmatprep.subr.mxu0 %v399
        %513 = vmatpush2.msra.mxu0 %v398
        %514 = vmatprep.subr.mxu0 %v395
        %515 = vmatpush2.msra.mxu0 %v394
        %516 = vmatprep.subr.mxu0 %v391
        %517 = vmatpush2.msra.mxu0 %v390
        %518 = vmatprep.mubr.f32.mxu0 %v323
        %519 = vmatmul.mubr.f32.gmra.mxu0 %v322
        %v520 = vpop.f32.mrf.mxu0
        %v521 = vadd.f32 0.0, %v520
        %v522 = vpop.f32.mrf.mxu0
        %v523 = vadd.f32 0.0, %v522
        %524 = vmatprep.mubr.f32.mxu0 %v325
        %525 = vmatmul.mubr.f32.gmra.mxu0 %v324
        %v526 = vpop.f32.mrf.mxu0
        %v527 = vadd.f32 0.0, %v526
        %v528 = vpop.f32.mrf.mxu0
        %v529 = vadd.f32 0.0, %v528
        %530 = vdwg.mxu0
        %531 = vmatprep.subr.mxu0 %v389
        %532 = vmatpush1.msra.mxu0 %v388
        %533 = vmatprep.subr.mxu0 %v385
        %534 = vmatpush1.msra.mxu0 %v384
        %535 = vmatprep.subr.mxu0 %v381
        %536 = vmatpush1.msra.mxu0 %v380
        %537 = vmatprep.subr.mxu0 %v377
        %538 = vmatpush1.msra.mxu0 %v376
        %539 = vmatprep.subr.mxu0 %v373
        %540 = vmatpush1.msra.mxu0 %v372
        %541 = vmatprep.subr.mxu0 %v369
        %542 = vmatpush1.msra.mxu0 %v368
        %543 = vmatprep.subr.mxu0 %v365
        %544 = vmatpush1.msra.mxu0 %v364
        %545 = vmatprep.subr.mxu0 %v361
        %546 = vmatpush1.msra.mxu0 %v360
        %547 = vmatprep.subr.mxu0 %v357
        %548 = vmatpush1.msra.mxu0 %v356
        %549 = vmatprep.subr.mxu0 %v353
        %550 = vmatpush1.msra.mxu0 %v352
        %551 = vmatprep.subr.mxu0 %v349
        %552 = vmatpush1.msra.mxu0 %v348
        %553 = vmatprep.subr.mxu0 %v345
        %554 = vmatpush1.msra.mxu0 %v344
        %555 = vmatprep.subr.mxu0 %v341
        %556 = vmatpush1.msra.mxu0 %v340
        %557 = vmatprep.subr.mxu0 %v337
        %558 = vmatpush1.msra.mxu0 %v336
        %559 = vmatprep.subr.mxu0 %v333
        %560 = vmatpush1.msra.mxu0 %v332
        %561 = vmatprep.subr.mxu0 %v329
        %562 = vmatpush1.msra.mxu0 %v328
        %563 = vmatprep.subr.mxu0 %v453
        %564 = vmatpush2.msra.mxu0 %v452
        %565 = vmatprep.subr.mxu0 %v449
        %566 = vmatpush2.msra.mxu0 %v448
        %567 = vmatprep.subr.mxu0 %v445
        %568 = vmatpush2.msra.mxu0 %v444
        %569 = vmatprep.subr.mxu0 %v441
        %570 = vmatpush2.msra.mxu0 %v440
        %571 = vmatprep.subr.mxu0 %v437
        %572 = vmatpush2.msra.mxu0 %v436
        %573 = vmatprep.subr.mxu0 %v433
        %574 = vmatpush2.msra.mxu0 %v432
        %575 = vmatprep.subr.mxu0 %v429
        %576 = vmatpush2.msra.mxu0 %v428
        %577 = vmatprep.subr.mxu0 %v425
        %578 = vmatpush2.msra.mxu0 %v424
        %579 = vmatprep.subr.mxu0 %v421
        %580 = vmatpush2.msra.mxu0 %v420
        %581 = vmatprep.subr.mxu0 %v417
        %582 = vmatpush2.msra.mxu0 %v416
        %583 = vmatprep.subr.mxu0 %v413
        %584 = vmatpush2.msra.mxu0 %v412
        %585 = vmatprep.subr.mxu0 %v409
        %586 = vmatpush2.msra.mxu0 %v408
        %587 = vmatprep.subr.mxu0 %v405
        %588 = vmatpush2.msra.mxu0 %v404
        %589 = vmatprep.subr.mxu0 %v401
        %590 = vmatpush2.msra.mxu0 %v400
        %591 = vmatprep.subr.mxu0 %v397
        %592 = vmatpush2.msra.mxu0 %v396
        %593 = vmatprep.subr.mxu0 %v393
        %594 = vmatpush2.msra.mxu0 %v392
        %595 = vmatprep.mubr.f32.mxu0 %v323
        %596 = vmatmul.mubr.f32.gmra.mxu0 %v322
        %v597 = vpop.f32.mrf.mxu0
        %v598 = vadd.f32 0.0, %v597
        %v599 = vpop.f32.mrf.mxu0
        %v600 = vadd.f32 0.0, %v599
        %601 = vmatprep.mubr.f32.mxu0 %v325
        %602 = vmatmul.mubr.f32.gmra.mxu0 %v324
        %v603 = vpop.f32.mrf.mxu0
        %v604 = vadd.f32 0.0, %v603
        %v605 = vpop.f32.mrf.mxu0
        %v606 = vadd.f32 0.0, %v605
        %607 = vdwg.mxu0
        %v608 = vadd.f32 %v314, %v521
        %v609 = vadd.f32 %v315, %v523
        %v610 = vadd.f32 %v316, %v598
        %v611 = vadd.f32 %v317, %v600
        %v612 = vadd.f32 %v318, %v527
        %v613 = vadd.f32 %v319, %v529
        %v614 = vadd.f32 %v320, %v604
        %v615 = vadd.f32 %v321, %v606
        %616 = vst [vmem:[#allocation2] sm:$0xff] %v608
        %617 = vst [vmem:[#allocation2 + $0x8] sm:$0xff] %v609
        %618 = vst [vmem:[#allocation2 + $0x10] sm:$0xff] %v610
        %619 = vst [vmem:[#allocation2 + $0x18] sm:$0xff] %v611
        %620 = vst [vmem:[#allocation2 + $0x20] sm:$0xff] %v612
        %621 = vst [vmem:[#allocation2 + $0x28] sm:$0xff] %v613
        %622 = vst [vmem:[#allocation2 + $0x30] sm:$0xff] %v614
        %623 = vst [vmem:[#allocation2 + $0x38] sm:$0xff] %v615
        %p624 = scmp.eq.s32.totalorder %s30, 2
        // Predicated region
        $region49: #{tpu_custom_call.1} parent=31 // pred_check
          %p625 = pneg %p624
        $region50: #{tpu_custom_call.1} parent=31 // pred_check_branch
          %627 = sbr.rel (%p625) target = $region52
        $region51: #{tpu_custom_call.1} parent=31 // pred_region
          %v628 = vld [vmem:[#allocation2] sm:$0xff]
          %v629 = vld [vmem:[#allocation2 + $0x8] sm:$0xff]
          %v630 = vld [vmem:[#allocation2 + $0x10] sm:$0xff]
          %v631 = vld [vmem:[#allocation2 + $0x18] sm:$0xff]
          %v632 = vld [vmem:[#allocation2 + $0x20] sm:$0xff]
          %v633 = vld [vmem:[#allocation2 + $0x28] sm:$0xff]
          %v634 = vld [vmem:[#allocation2 + $0x30] sm:$0xff]
          %v635 = vld [vmem:[#allocation2 + $0x38] sm:$0xff]
          %v636 = vld [vmem:[%s262] sm:$0xf]
          %v638 = vlaneseq
          %v639 = vshrl.u32 %v638, 7
          %v640 = vsub.s32 0, %v639
          %v641 = vrot.slane %v636, %v640
          %v642 = vlaneseq
          %v643 = vshrl.u32 %v642, 7
          %v644 = vsub.s32 1, %v643
          %v645 = vrot.slane %v636, %v644
          %v646 = vlaneseq
          %v647 = vshrl.u32 %v646, 7
          %v648 = vsub.s32 2, %v647
          %v649 = vrot.slane %v636, %v648
          %v650 = vlaneseq
          %v651 = vshrl.u32 %v650, 7
          %v652 = vsub.s32 3, %v651
          %v653 = vrot.slane %v636, %v652
          %v658 = vadd.f32 %v628, %v641
          %v659 = vadd.f32 %v629, %v645
          %v660 = vadd.f32 %v630, %v649
          %v661 = vadd.f32 %v631, %v653
          %v662 = vadd.f32 %v632, %v641
          %v663 = vadd.f32 %v633, %v645
          %v664 = vadd.f32 %v634, %v649
          %v665 = vadd.f32 %v635, %v653
          %v666 = vmul.f32 %v658, 0.5
          %v667 = vmul.f32 %v659, 0.5
          %v668 = vmul.f32 %v660, 0.5
          %v669 = vmul.f32 %v661, 0.5
          %v670 = vmul.f32 %v662, 0.5
          %v671 = vmul.f32 %v663, 0.5
          %v672 = vmul.f32 %v664, 0.5
          %v673 = vmul.f32 %v665, 0.5
          %v674 = vmul.f32 %v658, 0.70710677
          %v675 = vmul.f32 %v659, 0.70710677
          %v676 = vmul.f32 %v660, 0.70710677
          %v677 = vmul.f32 %v661, 0.70710677
          %v678 = vmul.f32 %v662, 0.70710677
          %v679 = vmul.f32 %v663, 0.70710677
          %v680 = vmul.f32 %v664, 0.70710677
          %v681 = vmul.f32 %v665, 0.70710677
          %v682 = vand.u32 2147483647, %v674
          %v683 = vand.u32 2147483647, %v675
          %v684 = vand.u32 2147483647, %v676
          %v685 = vand.u32 2147483647, %v677
          %v686 = vand.u32 2147483647, %v678
          %v687 = vand.u32 2147483647, %v679
          %v688 = vand.u32 2147483647, %v680
          %v689 = vand.u32 2147483647, %v681
          %v690 = vmul.f32 %v682, 0.3275911
          %v691 = vmul.f32 %v683, 0.3275911
          %v692 = vmul.f32 %v684, 0.3275911
          %v693 = vmul.f32 %v685, 0.3275911
          %v694 = vmul.f32 %v686, 0.3275911
          %v695 = vmul.f32 %v687, 0.3275911
          %v696 = vmul.f32 %v688, 0.3275911
          %v697 = vmul.f32 %v689, 0.3275911
          %v698 = vadd.f32 %v690, 1.0
          %v699 = vadd.f32 %v691, 1.0
          %v700 = vadd.f32 %v692, 1.0
          %v701 = vadd.f32 %v693, 1.0
          %v702 = vadd.f32 %v694, 1.0
          %v703 = vadd.f32 %v695, 1.0
          %v704 = vadd.f32 %v696, 1.0
          %v705 = vadd.f32 %v697, 1.0
          %v706 = vrcp.pop %v698
          %v707 = vmul.f32 1.0, %v706
          %v708 = vrcp.pop %v699
          %v709 = vmul.f32 1.0, %v708
          %v710 = vrcp.pop %v700
          %v711 = vmul.f32 1.0, %v710
          %v712 = vrcp.pop %v701
          %v713 = vmul.f32 1.0, %v712
          %v714 = vrcp.pop %v702
          %v715 = vmul.f32 1.0, %v714
          %v716 = vrcp.pop %v703
          %v717 = vmul.f32 1.0, %v716
          %v718 = vrcp.pop %v704
          %v719 = vmul.f32 1.0, %v718
          %v720 = vrcp.pop %v705
          %v721 = vmul.f32 1.0, %v720
          %v722 = vmul.f32 %v707, 1.0614054
          %v723 = vmul.f32 %v709, 1.0614054
          %v724 = vmul.f32 %v711, 1.0614054
          %v725 = vmul.f32 %v713, 1.0614054
          %v726 = vmul.f32 %v715, 1.0614054
          %v727 = vmul.f32 %v717, 1.0614054
          %v728 = vmul.f32 %v719, 1.0614054
          %v729 = vmul.f32 %v721, 1.0614054
          %v730 = vadd.f32 %v722, -1.4531521
          %v731 = vadd.f32 %v723, -1.4531521
          %v732 = vadd.f32 %v724, -1.4531521
          %v733 = vadd.f32 %v725, -1.4531521
          %v734 = vadd.f32 %v726, -1.4531521
          %v735 = vadd.f32 %v727, -1.4531521
          %v736 = vadd.f32 %v728, -1.4531521
          %v737 = vadd.f32 %v729, -1.4531521
          %v738 = vmul.f32 %v707, %v730
          %v739 = vmul.f32 %v709, %v731
          %v740 = vmul.f32 %v711, %v732
          %v741 = vmul.f32 %v713, %v733
          %v742 = vmul.f32 %v715, %v734
          %v743 = vmul.f32 %v717, %v735
          %v744 = vmul.f32 %v719, %v736
          %v745 = vmul.f32 %v721, %v737
          %v746 = vadd.f32 %v738, 1.4214138
          %v747 = vadd.f32 %v739, 1.4214138
          %v748 = vadd.f32 %v740, 1.4214138
          %v749 = vadd.f32 %v741, 1.4214138
          %v750 = vadd.f32 %v742, 1.4214138
          %v751 = vadd.f32 %v743, 1.4214138
          %v752 = vadd.f32 %v744, 1.4214138
          %v753 = vadd.f32 %v745, 1.4214138
          %v754 = vmul.f32 %v707, %v746
          %v755 = vmul.f32 %v709, %v747
          %v756 = vmul.f32 %v711, %v748
          %v757 = vmul.f32 %v713, %v749
          %v758 = vmul.f32 %v715, %v750
          %v759 = vmul.f32 %v717, %v751
          %v760 = vmul.f32 %v719, %v752
          %v761 = vmul.f32 %v721, %v753
          %v762 = vadd.f32 %v754, -0.28449672
          %v763 = vadd.f32 %v755, -0.28449672
          %v764 = vadd.f32 %v756, -0.28449672
          %v765 = vadd.f32 %v757, -0.28449672
          %v766 = vadd.f32 %v758, -0.28449672
          %v767 = vadd.f32 %v759, -0.28449672
          %v768 = vadd.f32 %v760, -0.28449672
          %v769 = vadd.f32 %v761, -0.28449672
          %v770 = vmul.f32 %v707, %v762
          %v771 = vmul.f32 %v709, %v763
          %v772 = vmul.f32 %v711, %v764
          %v773 = vmul.f32 %v713, %v765
          %v774 = vmul.f32 %v715, %v766
          %v775 = vmul.f32 %v717, %v767
          %v776 = vmul.f32 %v719, %v768
          %v777 = vmul.f32 %v721, %v769
          %v778 = vadd.f32 %v770, 0.2548296
          %v779 = vadd.f32 %v771, 0.2548296
          %v780 = vadd.f32 %v772, 0.2548296
          %v781 = vadd.f32 %v773, 0.2548296
          %v782 = vadd.f32 %v774, 0.2548296
          %v783 = vadd.f32 %v775, 0.2548296
          %v784 = vadd.f32 %v776, 0.2548296
          %v785 = vadd.f32 %v777, 0.2548296
          %v786 = vmul.f32 %v707, %v778
          %v787 = vmul.f32 %v709, %v779
          %v788 = vmul.f32 %v711, %v780
          %v789 = vmul.f32 %v713, %v781
          %v790 = vmul.f32 %v715, %v782
          %v791 = vmul.f32 %v717, %v783
          %v792 = vmul.f32 %v719, %v784
          %v793 = vmul.f32 %v721, %v785
          %v794 = vsub.f32 0.0, %v682
          %v795 = vsub.f32 0.0, %v683
          %v796 = vsub.f32 0.0, %v684
          %v797 = vsub.f32 0.0, %v685
          %v798 = vsub.f32 0.0, %v686
          %v799 = vsub.f32 0.0, %v687
          %v800 = vsub.f32 0.0, %v688
          %v801 = vsub.f32 0.0, %v689
          %v802 = vmul.f32 %v794, %v682
          %v803 = vmul.f32 %v795, %v683
          %v804 = vmul.f32 %v796, %v684
          %v805 = vmul.f32 %v797, %v685
          %v806 = vmul.f32 %v798, %v686
          %v807 = vmul.f32 %v799, %v687
          %v808 = vmul.f32 %v800, %v688
          %v809 = vmul.f32 %v801, %v689
          %v810 = vmul.f32 %v802, 1.442695
          %v811 = vpow.pop %v810
          %v812 = vmul.f32 %v803, 1.442695
          %v813 = vpow.pop %v812
          %v814 = vmul.f32 %v804, 1.442695
          %v815 = vpow.pop %v814
          %v816 = vmul.f32 %v805, 1.442695
          %v817 = vpow.pop %v816
          %v818 = vmul.f32 %v806, 1.442695
          %v819 = vpow.pop %v818
          %v820 = vmul.f32 %v807, 1.442695
          %v821 = vpow.pop %v820
          %v822 = vmul.f32 %v808, 1.442695
          %v823 = vpow.pop %v822
          %v824 = vmul.f32 %v809, 1.442695
          %v825 = vpow.pop %v824
          %v826 = vmul.f32 %v786, %v811
          %v827 = vmul.f32 %v787, %v813
          %v828 = vmul.f32 %v788, %v815
          %v829 = vmul.f32 %v789, %v817
          %v830 = vmul.f32 %v790, %v819
          %v831 = vmul.f32 %v791, %v821
          %v832 = vmul.f32 %v792, %v823
          %v833 = vmul.f32 %v793, %v825
          %v834 = vsub.f32 1.0, %v826
          %v835 = vsub.f32 1.0, %v827
          %v836 = vsub.f32 1.0, %v828
          %v837 = vsub.f32 1.0, %v829
          %v838 = vsub.f32 1.0, %v830
          %v839 = vsub.f32 1.0, %v831
          %v840 = vsub.f32 1.0, %v832
          %v841 = vsub.f32 1.0, %v833
          %vm842 = vcmp.lt.f32.partialorder %v674, 0.0
          %vm843 = vcmp.lt.f32.partialorder %v675, 0.0
          %vm844 = vcmp.lt.f32.partialorder %v676, 0.0
          %vm845 = vcmp.lt.f32.partialorder %v677, 0.0
          %vm846 = vcmp.lt.f32.partialorder %v678, 0.0
          %vm847 = vcmp.lt.f32.partialorder %v679, 0.0
          %vm848 = vcmp.lt.f32.partialorder %v680, 0.0
          %vm849 = vcmp.lt.f32.partialorder %v681, 0.0
          %v850 = vsub.f32 0.0, %v834
          %v851 = vsub.f32 0.0, %v835
          %v852 = vsub.f32 0.0, %v836
          %v853 = vsub.f32 0.0, %v837
          %v854 = vsub.f32 0.0, %v838
          %v855 = vsub.f32 0.0, %v839
          %v856 = vsub.f32 0.0, %v840
          %v857 = vsub.f32 0.0, %v841
          %v858 = vsel %vm842, %v850, %v834
          %v859 = vsel %vm843, %v851, %v835
          %v860 = vsel %vm844, %v852, %v836
          %v861 = vsel %vm845, %v853, %v837
          %v862 = vsel %vm846, %v854, %v838
          %v863 = vsel %vm847, %v855, %v839
          %v864 = vsel %vm848, %v856, %v840
          %v865 = vsel %vm849, %v857, %v841
          %v866 = vadd.f32 %v858, 1.0
          %v867 = vadd.f32 %v859, 1.0
          %v868 = vadd.f32 %v860, 1.0
          %v869 = vadd.f32 %v861, 1.0
          %v870 = vadd.f32 %v862, 1.0
          %v871 = vadd.f32 %v863, 1.0
          %v872 = vadd.f32 %v864, 1.0
          %v873 = vadd.f32 %v865, 1.0
          %v874 = vmul.f32 %v666, %v866
          %v875 = vmul.f32 %v667, %v867
          %v876 = vmul.f32 %v668, %v868
          %v877 = vmul.f32 %v669, %v869
          %v878 = vmul.f32 %v670, %v870
          %v879 = vmul.f32 %v671, %v871
          %v880 = vmul.f32 %v672, %v872
          %v881 = vmul.f32 %v673, %v873
          %882 = vst [vmem:[%s294] sm:$0xff] %v874
          %883 = vst [vmem:[%s294 + $0x8] sm:$0xff] %v875
          %884 = vst [vmem:[%s294 + $0x10] sm:$0xff] %v876
          %885 = vst [vmem:[%s294 + $0x18] sm:$0xff] %v877
          %886 = vst [vmem:[%s294 + $0x20] sm:$0xff] %v878
          %887 = vst [vmem:[%s294 + $0x28] sm:$0xff] %v879
          %888 = vst [vmem:[%s294 + $0x30] sm:$0xff] %v880
          %889 = vst [vmem:[%s294 + $0x38] sm:$0xff] %v881
        $region52: #{tpu_custom_call.1} parent=31 // pred_fallthru
          _
        %s890 = sand.u32 %s134, 1
        %s891 = scalar_lea.sflag [#allocation5], %s890
        %s892 = sand.u32 %s134, 1
        %s893 = smul.addr %s892, 64
        %s894 = scalar_lea.vmem [#allocation9], %s893
        // Predicated region
        $region53: #{tpu_custom_call.1} parent=31 // pred_check
          %p895 = pneg %p144
        $region54: #{tpu_custom_call.1} parent=31 // pred_check_branch
          %897 = sbr.rel (%p895) target = $region56
        $region55: #{tpu_custom_call.1} parent=31 // pred_region
          %s898 = smul.u32 2, %s28
          %s899 = smul.u32 4, %s29
          %s901 = ssub.s32 1024, 1024
          %902 = vsyncadd %s891, %s901
          %s903 = smul.addr %s898, 24
          %s904 = sadd.s32 %s899, %s903
          %s905 = smul.addr %s904, 128
          %s906 = scalar_lea.hbm %s3, %s905
          %s907 = sshll.u32 %s894, 4
          %s908 = int_to_ptr.vmem [resolvable:$true] %s907
          %913 = dma.vmem_to_hbm [thread:$0]  %s908, 1024, %s906, %s891, 512, 3072, 32
        $region56: #{tpu_custom_call.1} parent=31 // pred_fallthru
          _
      $region32: #{tpu_custom_call.1} parent=5 // pred_fallthru
        _
      %p914 = scmp.le.s32.totalorder 2, %s18
      // Predicated region
      $region57: #{tpu_custom_call.1} parent=5 // pred_check
        %p915 = pneg %p914
      $region58: #{tpu_custom_call.1} parent=5 // pred_check_branch
        %917 = sbr.rel (%p915) target = $region60
      $region59: #{tpu_custom_call.1} parent=5 // pred_region
        %s918 = ssub.s32 %s18, 2
        // Predicated region
        $region61: #{tpu_custom_call.1} parent=59 // pred_check
          %p919 = pneg %p150
        $region62: #{tpu_custom_call.1} parent=59 // pred_check_branch
          %921 = sbr.rel (%p919) target = $region64
        $region63: #{tpu_custom_call.1} parent=59 // pred_region
          %s922 = sand.u32 %s135, 1
          %s923 = scalar_lea.sflag [#allocation5], %s922
          %s924 = sand.u32 %s135, 1
          %s925 = smul.addr %s924, 64
          %s926 = scalar_lea.vmem [#allocation9], %s925
          %927 = dma.done %s923, 1024
        $region64: #{tpu_custom_call.1} parent=59 // pred_fallthru
          _
      $region60: #{tpu_custom_call.1} parent=5 // pred_fallthru
        _
    $region6: #{tpu_custom_call.1} parent=1 // loop_footer
      %s22 = sadd.s32 1, %s18
    $region7: #{tpu_custom_call.1} parent=1 // loop_footer_branch
      %17 = sbr.rel target = $region3
    $region8: #{tpu_custom_call.1} parent=1 // loop_exit
      _
    %928 = vsyncpa [#allocation4], 1
    %s929 = scalar_lea.sflag [#allocation4], 1
    %930 = vsyncpa %s929, 1
    %931 = vsyncpa [#allocation7], 1
    %s932 = scalar_lea.sflag [#allocation7], 1
    %933 = vsyncpa %s932, 1
    %934 = vsyncpa [#allocation5], 1
    %s935 = scalar_lea.sflag [#allocation5], 1
    %936 = vsyncpa %s935, 1

</llo_original>
